<compile_context>
chip_gen: v7x
topology: tpu7x:2x2x1
jax: 0.10.0
libtpu: 0.0.40
codegen_flags: <defaults>
</compile_context>

<pallas_src>
import jax
import jax.numpy as jnp
from jax.experimental import pallas as pl
from jax.experimental.pallas import tpu as pltpu

NEG_SLOPE = 0.1  # LeakyReLU negative_slope


def _leaky_relu(v):
    return jnp.where(v > 0, v, NEG_SLOPE * v)


def _full_mlp_kernel(x_ref,
                     w1_ref, b1_ref,
                     w2_ref, b2_ref,
                     w3_ref, b3_ref,
                     w4_ref, b4_ref,
                     w5_ref, b5_ref,
                     o_ref):
    # x_ref: (TB, in) tile in VMEM; all weights/biases fully resident in VMEM.
    h = x_ref[...]
    h = _leaky_relu(jnp.dot(h, w1_ref[...], preferred_element_type=jnp.float32)
                    + b1_ref[...])
    h = _leaky_relu(jnp.dot(h, w2_ref[...], preferred_element_type=jnp.float32)
                    + b2_ref[...])
    # nn.Dropout(p=0.1) is the identity at inference time.
    # TODO(synk): training-mode dropout (pltpu.prng_seed / prng_random_bits) not implemented.
    h = _leaky_relu(jnp.dot(h, w3_ref[...], preferred_element_type=jnp.float32)
                    + b3_ref[...])
    h = _leaky_relu(jnp.dot(h, w4_ref[...], preferred_element_type=jnp.float32)
                    + b4_ref[...])
    h = jnp.dot(h, w5_ref[...], preferred_element_type=jnp.float32) + b5_ref[...]
    o_ref[...] = h.astype(o_ref.dtype)


def _pick_tile_b(B, max_tile=1024):
    """Largest batch tile that divides B, is a multiple of 8 (sublane), is <= max_tile,
    and (when possible) leaves >=2 grid programs for v7x's 2 TensorCores."""
    best = B  # fall back to a single full-batch tile (block == full dim is always legal)
    for t in range(min(B, max_tile), 7, -1):
        if B % t == 0 and t % 8 == 0:
            if B // t >= 2:
                return t
            if best == B:
                best = t
    return best


def full_mlp(x, params, *, tile_b=None):
    """x: (B, C, H, W) or (B, in) float32; params: list of 5 (W:(in,out), b:(1,out))."""
    B = x.shape[0]
    x2 = x.reshape(B, -1)                      # x.view(B, -1)
    in_size = params[0][0].shape[0]
    out_size = params[-1][0].shape[1]
    assert x2.shape[1] == in_size, (x2.shape, in_size)

    if tile_b is None:
        tile_b = _pick_tile_b(B)
    assert B % tile_b == 0, "tile_b must divide B (avoid ragged padded rows)"
    grid = (B // tile_b,)

    row_map = lambda i: (i, 0)                 # batch tile moves with the grid
    const_map = lambda i: (0, 0)               # weights/biases resident across the grid

    in_specs = [pl.BlockSpec((tile_b, in_size), row_map)]
    flat_args = [x2]
    for (w, b) in params:
        in_specs.append(pl.BlockSpec(w.shape, const_map))
        in_specs.append(pl.BlockSpec(b.shape, const_map))
        flat_args += [w, b]

    flops = 2 * B * sum(int(w.shape[0]) * int(w.shape[1]) for w, _ in params)
    bytes_accessed = 4 * (x2.size + B * out_size
                          + sum(int(w.size) + int(b.size) for w, b in params))

    return pl.pallas_call(
        _full_mlp_kernel,
        out_shape=jax.ShapeDtypeStruct((B, out_size), x2.dtype),
        grid_spec=pltpu.PrefetchScalarGridSpec(
            num_scalar_prefetch=0,
            grid=grid,
            in_specs=in_specs,
            out_specs=pl.BlockSpec((tile_b, out_size), row_map),
        ),
        compiler_params=pltpu.CompilerParams(
            dimension_semantics=("parallel",),
            vmem_limit_bytes=64 * 1024 * 1024,
        ),
        cost_estimate=pl.CostEstimate(
            flops=flops, transcendentals=0, bytes_accessed=bytes_accessed),
    )(*flat_args)


def _reference(x, params):
    h = x.reshape(x.shape[0], -1)
    n = len(params)
    for i, (w, b) in enumerate(params):
        h = h @ w + b
        if i < n - 1:
            h = jnp.where(h > 0, h, NEG_SLOPE * h)
        # Dropout(p=0.1) after layer 2 is identity at inference.
    return h


if __name__ == "__main__":
    key = jax.random.PRNGKey(0)

    # Small config consistent with FullMLP:
    #   image_size=8, channels=2  -> input_size = 8*8*2 = 128
    #   ngf=32                    -> hidden dims 256, 192, 128, 128
    #   final_layer=False         -> output_size = input_size = 128
    image_size, channels, ngf = 8, 2, 32
    input_size = image_size * image_size * channels
    output_size = input_size
    dims = [input_size, ngf * 8, ngf * 6, ngf * 4, ngf * 4, output_size]
    B = 16

    keys = jax.random.split(key, 1 + 2 * 5)
    x = jax.random.normal(keys[0], (B, channels, image_size, image_size),
                          dtype=jnp.float32)

    params = []
    for li in range(5):
        fan_in = dims[li]
        w = jax.random.normal(keys[1 + 2 * li], (dims[li], dims[li + 1]),
                              dtype=jnp.float32) / jnp.sqrt(jnp.float32(fan_in))
        b = 0.01 * jax.random.normal(keys[2 + 2 * li], (1, dims[li + 1]),
                                     dtype=jnp.float32)
        params.append((w, b))

    out = full_mlp(x, params)
    jax.block_until_ready(out)

    ref = _reference(x, params)
    assert out.shape == (B, output_size), out.shape
    err = float(jnp.max(jnp.abs(out - ref)))
    assert jnp.allclose(out, ref, atol=2e-2, rtol=2e-2), f"mismatch vs reference, max err={err}"

    print("KERNEL_OK")
</pallas_src>

<mosaic_0001>
module attributes {stable_mosaic.version = 11 : i64} {
  func.func @_full_mlp_kernel(%arg0: i32, %arg1: memref<8x128xf32, #tpu.memory_space<vmem>>, %arg2: memref<128x256xf32, #tpu.memory_space<vmem>>, %arg3: memref<1x256xf32, #tpu.memory_space<vmem>>, %arg4: memref<256x192xf32, #tpu.memory_space<vmem>>, %arg5: memref<1x192xf32, #tpu.memory_space<vmem>>, %arg6: memref<192x128xf32, #tpu.memory_space<vmem>>, %arg7: memref<1x128xf32, #tpu.memory_space<vmem>>, %arg8: memref<128x128xf32, #tpu.memory_space<vmem>>, %arg9: memref<1x128xf32, #tpu.memory_space<vmem>>, %arg10: memref<128x128xf32, #tpu.memory_space<vmem>>, %arg11: memref<1x128xf32, #tpu.memory_space<vmem>>, %arg12: memref<8x128xf32, #tpu.memory_space<vmem>>) attributes {dimension_semantics = [#tpu.dimension_semantics<parallel>], iteration_bounds = array<i64: 2>, scalar_prefetch = 0 : i64, scratch_operands = 0 : i64, tpu.core_type = #tpu.core_type<tc>, window_params = [{transform_indices = @transform_0, window_bounds = array<i64: 8, 128>}, {pipeline_mode = #tpu.pipeline_mode<synchronous>, transform_indices = @transform_1, window_bounds = array<i64: 128, 256>}, {pipeline_mode = #tpu.pipeline_mode<synchronous>, transform_indices = @transform_2, window_bounds = array<i64: 1, 256>}, {pipeline_mode = #tpu.pipeline_mode<synchronous>, transform_indices = @transform_3, window_bounds = array<i64: 256, 192>}, {pipeline_mode = #tpu.pipeline_mode<synchronous>, transform_indices = @transform_4, window_bounds = array<i64: 1, 192>}, {pipeline_mode = #tpu.pipeline_mode<synchronous>, transform_indices = @transform_5, window_bounds = array<i64: 192, 128>}, {pipeline_mode = #tpu.pipeline_mode<synchronous>, transform_indices = @transform_6, window_bounds = array<i64: 1, 128>}, {pipeline_mode = #tpu.pipeline_mode<synchronous>, transform_indices = @transform_7, window_bounds = array<i64: 128, 128>}, {pipeline_mode = #tpu.pipeline_mode<synchronous>, transform_indices = @transform_8, window_bounds = array<i64: 1, 128>}, {pipeline_mode = #tpu.pipeline_mode<synchronous>, transform_indices = @transform_9, window_bounds = array<i64: 128, 128>}, {pipeline_mode = #tpu.pipeline_mode<synchronous>, transform_indices = @transform_10, window_bounds = array<i64: 1, 128>}, {transform_indices = @transform_11, window_bounds = array<i64: 8, 128>}]} {
    %c0 = arith.constant 0 : index
    %c0_0 = arith.constant 0 : index
    %0 = vector.load %arg1[%c0, %c0_0] : memref<8x128xf32, #tpu.memory_space<vmem>>, vector<8x128xf32>
    %c0_1 = arith.constant 0 : index
    %c0_2 = arith.constant 0 : index
    %1 = vector.load %arg2[%c0_1, %c0_2] : memref<128x256xf32, #tpu.memory_space<vmem>>, vector<128x256xf32>
    %cst = arith.constant dense<0.000000e+00> : vector<8x256xf32>
    %2 = tpu.matmul %0, %1, %cst {dimension_numbers = #tpu.dot_dimension_numbers<[1], [0], [0], [1], [0, 0, 1, 1], [], []>} : vector<8x128xf32>, vector<128x256xf32>, vector<8x256xf32> -> vector<8x256xf32>
    %c0_3 = arith.constant 0 : index
    %c0_4 = arith.constant 0 : index
    %3 = vector.load %arg3[%c0_3, %c0_4] : memref<1x256xf32, #tpu.memory_space<vmem>>, vector<1x256xf32>
    %4 = vector.broadcast %3 : vector<1x256xf32> to vector<8x256xf32>
    %5 = arith.addf %2, %4 : vector<8x256xf32>
    %cst_5 = arith.constant 0.000000e+00 : f32
    %6 = vector.broadcast %cst_5 : f32 to vector<8x256xf32>
    %7 = arith.cmpf ogt, %5, %6 : vector<8x256xf32>
    %cst_6 = arith.constant 1.000000e-01 : f32
    %8 = vector.broadcast %cst_6 : f32 to vector<8x256xf32>
    %9 = arith.mulf %8, %5 : vector<8x256xf32>
    %10 = arith.select %7, %5, %9 : vector<8x256xi1>, vector<8x256xf32>
    %c0_7 = arith.constant 0 : index
    %c0_8 = arith.constant 0 : index
    %11 = vector.load %arg4[%c0_7, %c0_8] : memref<256x192xf32, #tpu.memory_space<vmem>>, vector<256x192xf32>
    %cst_9 = arith.constant dense<0.000000e+00> : vector<8x192xf32>
    %12 = tpu.matmul %10, %11, %cst_9 {dimension_numbers = #tpu.dot_dimension_numbers<[1], [0], [0], [1], [0, 0, 1, 1], [], []>} : vector<8x256xf32>, vector<256x192xf32>, vector<8x192xf32> -> vector<8x192xf32>
    %c0_10 = arith.constant 0 : index
    %c0_11 = arith.constant 0 : index
    %13 = vector.load %arg5[%c0_10, %c0_11] : memref<1x192xf32, #tpu.memory_space<vmem>>, vector<1x192xf32>
    %14 = vector.broadcast %13 : vector<1x192xf32> to vector<8x192xf32>
    %15 = arith.addf %12, %14 : vector<8x192xf32>
    %cst_12 = arith.constant 0.000000e+00 : f32
    %16 = vector.broadcast %cst_12 : f32 to vector<8x192xf32>
    %17 = arith.cmpf ogt, %15, %16 : vector<8x192xf32>
    %cst_13 = arith.constant 1.000000e-01 : f32
    %18 = vector.broadcast %cst_13 : f32 to vector<8x192xf32>
    %19 = arith.mulf %18, %15 : vector<8x192xf32>
    %20 = arith.select %17, %15, %19 : vector<8x192xi1>, vector<8x192xf32>
    %c0_14 = arith.constant 0 : index
    %c0_15 = arith.constant 0 : index
    %21 = vector.load %arg6[%c0_14, %c0_15] : memref<192x128xf32, #tpu.memory_space<vmem>>, vector<192x128xf32>
    %cst_16 = arith.constant dense<0.000000e+00> : vector<8x128xf32>
    %22 = tpu.matmul %20, %21, %cst_16 {dimension_numbers = #tpu.dot_dimension_numbers<[1], [0], [0], [1], [0, 0, 1, 1], [], []>} : vector<8x192xf32>, vector<192x128xf32>, vector<8x128xf32> -> vector<8x128xf32>
    %c0_17 = arith.constant 0 : index
    %c0_18 = arith.constant 0 : index
    %23 = vector.load %arg7[%c0_17, %c0_18] : memref<1x128xf32, #tpu.memory_space<vmem>>, vector<1x128xf32>
    %24 = vector.broadcast %23 : vector<1x128xf32> to vector<8x128xf32>
    %25 = arith.addf %22, %24 : vector<8x128xf32>
    %cst_19 = arith.constant 0.000000e+00 : f32
    %26 = vector.broadcast %cst_19 : f32 to vector<8x128xf32>
    %27 = arith.cmpf ogt, %25, %26 : vector<8x128xf32>
    %cst_20 = arith.constant 1.000000e-01 : f32
    %28 = vector.broadcast %cst_20 : f32 to vector<8x128xf32>
    %29 = arith.mulf %28, %25 : vector<8x128xf32>
    %30 = arith.select %27, %25, %29 : vector<8x128xi1>, vector<8x128xf32>
    %c0_21 = arith.constant 0 : index
    %c0_22 = arith.constant 0 : index
    %31 = vector.load %arg8[%c0_21, %c0_22] : memref<128x128xf32, #tpu.memory_space<vmem>>, vector<128x128xf32>
    %cst_23 = arith.constant dense<0.000000e+00> : vector<8x128xf32>
    %32 = tpu.matmul %30, %31, %cst_23 {dimension_numbers = #tpu.dot_dimension_numbers<[1], [0], [0], [1], [0, 0, 1, 1], [], []>} : vector<8x128xf32>, vector<128x128xf32>, vector<8x128xf32> -> vector<8x128xf32>
    %c0_24 = arith.constant 0 : index
    %c0_25 = arith.constant 0 : index
    %33 = vector.load %arg9[%c0_24, %c0_25] : memref<1x128xf32, #tpu.memory_space<vmem>>, vector<1x128xf32>
    %34 = vector.broadcast %33 : vector<1x128xf32> to vector<8x128xf32>
    %35 = arith.addf %32, %34 : vector<8x128xf32>
    %cst_26 = arith.constant 0.000000e+00 : f32
    %36 = vector.broadcast %cst_26 : f32 to vector<8x128xf32>
    %37 = arith.cmpf ogt, %35, %36 : vector<8x128xf32>
    %cst_27 = arith.constant 1.000000e-01 : f32
    %38 = vector.broadcast %cst_27 : f32 to vector<8x128xf32>
    %39 = arith.mulf %38, %35 : vector<8x128xf32>
    %40 = arith.select %37, %35, %39 : vector<8x128xi1>, vector<8x128xf32>
    %c0_28 = arith.constant 0 : index
    %c0_29 = arith.constant 0 : index
    %41 = vector.load %arg10[%c0_28, %c0_29] : memref<128x128xf32, #tpu.memory_space<vmem>>, vector<128x128xf32>
    %cst_30 = arith.constant dense<0.000000e+00> : vector<8x128xf32>
    %42 = tpu.matmul %40, %41, %cst_30 {dimension_numbers = #tpu.dot_dimension_numbers<[1], [0], [0], [1], [0, 0, 1, 1], [], []>} : vector<8x128xf32>, vector<128x128xf32>, vector<8x128xf32> -> vector<8x128xf32>
    %c0_31 = arith.constant 0 : index
    %c0_32 = arith.constant 0 : index
    %43 = vector.load %arg11[%c0_31, %c0_32] : memref<1x128xf32, #tpu.memory_space<vmem>>, vector<1x128xf32>
    %44 = vector.broadcast %43 : vector<1x128xf32> to vector<8x128xf32>
    %45 = arith.addf %42, %44 : vector<8x128xf32>
    %c0_33 = arith.constant 0 : index
    %c0_34 = arith.constant 0 : index
    %46 = vector.load %arg12[%c0_33, %c0_34] : memref<8x128xf32, #tpu.memory_space<vmem>>, vector<8x128xf32>
    tpu.vector_store %arg12[%c0_33, %c0_34], %45 {strides = array<i32>} : memref<8x128xf32, #tpu.memory_space<vmem>>, vector<8x128xf32>,
    return
  }
  func.func @transform_0(%arg0: i32) -> (i32, i32) {
    %c0_i32 = arith.constant 0 : i32
    %c0_i32_0 = arith.constant 0 : i32
    return %arg0, %c0_i32 : i32, i32
  }
  func.func @transform_1(%arg0: i32) -> (i32, i32) {
    %c0_i32 = arith.constant 0 : i32
    %c0_i32_0 = arith.constant 0 : i32
    %c0_i32_1 = arith.constant 0 : i32
    return %c0_i32, %c0_i32_0 : i32, i32
  }
  func.func @transform_2(%arg0: i32) -> (i32, i32) {
    %c0_i32 = arith.constant 0 : i32
    %c0_i32_0 = arith.constant 0 : i32
    %c0_i32_1 = arith.constant 0 : i32
    return %c0_i32, %c0_i32_0 : i32, i32
  }
  func.func @transform_3(%arg0: i32) -> (i32, i32) {
    %c0_i32 = arith.constant 0 : i32
    %c0_i32_0 = arith.constant 0 : i32
    %c0_i32_1 = arith.constant 0 : i32
    return %c0_i32, %c0_i32_0 : i32, i32
  }
  func.func @transform_4(%arg0: i32) -> (i32, i32) {
    %c0_i32 = arith.constant 0 : i32
    %c0_i32_0 = arith.constant 0 : i32
    %c0_i32_1 = arith.constant 0 : i32
    return %c0_i32, %c0_i32_0 : i32, i32
  }
  func.func @transform_5(%arg0: i32) -> (i32, i32) {
    %c0_i32 = arith.constant 0 : i32
    %c0_i32_0 = arith.constant 0 : i32
    %c0_i32_1 = arith.constant 0 : i32
    return %c0_i32, %c0_i32_0 : i32, i32
  }
  func.func @transform_6(%arg0: i32) -> (i32, i32) {
    %c0_i32 = arith.constant 0 : i32
    %c0_i32_0 = arith.constant 0 : i32
    %c0_i32_1 = arith.constant 0 : i32
    return %c0_i32, %c0_i32_0 : i32, i32
  }
  func.func @transform_7(%arg0: i32) -> (i32, i32) {
    %c0_i32 = arith.constant 0 : i32
    %c0_i32_0 = arith.constant 0 : i32
    %c0_i32_1 = arith.constant 0 : i32
    return %c0_i32, %c0_i32_0 : i32, i32
  }
  func.func @transform_8(%arg0: i32) -> (i32, i32) {
    %c0_i32 = arith.constant 0 : i32
    %c0_i32_0 = arith.constant 0 : i32
    %c0_i32_1 = arith.constant 0 : i32
    return %c0_i32, %c0_i32_0 : i32, i32
  }
  func.func @transform_9(%arg0: i32) -> (i32, i32) {
    %c0_i32 = arith.constant 0 : i32
    %c0_i32_0 = arith.constant 0 : i32
    %c0_i32_1 = arith.constant 0 : i32
    return %c0_i32, %c0_i32_0 : i32, i32
  }
  func.func @transform_10(%arg0: i32) -> (i32, i32) {
    %c0_i32 = arith.constant 0 : i32
    %c0_i32_0 = arith.constant 0 : i32
    %c0_i32_1 = arith.constant 0 : i32
    return %c0_i32, %c0_i32_0 : i32, i32
  }
  func.func @transform_11(%arg0: i32) -> (i32, i32) {
    %c0_i32 = arith.constant 0 : i32
    %c0_i32_0 = arith.constant 0 : i32
    return %arg0, %c0_i32 : i32, i32
  }
}

</mosaic_0001>

<llo_original>
// kernel: tpu_custom_call.1
$region0: #{tpu_custom_call.1}
  #allocation0 [shape = 'u32[]', space=smem, size = 0x4, offset = 0x4, fixed_abs, tag = 'smem constant byte address 0x4 - core index']
  #allocation1 [shape = 'u32[144,128]{1,0:T(1,128)}', space=vmem, size = 0x12000, scoped, tag = 'internal scratch']
  %s0 = inlined_call_operand.hbm [shape: f32[16,128], index: 0, kind: input, shape index: {}]
  %s1 = inlined_call_operand.hbm [shape: f32[128,256], index: 1, kind: input, shape index: {}]
  %s2 = inlined_call_operand.hbm [shape: f32[1,256], index: 2, kind: input, shape index: {}]
  %s3 = inlined_call_operand.hbm [shape: f32[256,192], index: 3, kind: input, shape index: {}]
  %s4 = inlined_call_operand.hbm [shape: f32[1,192], index: 4, kind: input, shape index: {}]
  %s5 = inlined_call_operand.hbm [shape: f32[192,128], index: 5, kind: input, shape index: {}]
  %s6 = inlined_call_operand.hbm [shape: f32[1,128], index: 6, kind: input, shape index: {}]
  %s7 = inlined_call_operand.hbm [shape: f32[128,128], index: 7, kind: input, shape index: {}]
  %s8 = inlined_call_operand.hbm [shape: f32[1,128], index: 8, kind: input, shape index: {}]
  %s9 = inlined_call_operand.hbm [shape: f32[128,128], index: 9, kind: input, shape index: {}]
  %s10 = inlined_call_operand.hbm [shape: f32[1,128], index: 10, kind: input, shape index: {}]
  %s11 = inlined_call_operand.hbm [shape: f32[16,128], index: 11, kind: output, shape index: {}]
  %s12 = sld [smem:[#allocation0]]
  $region121: #{tpu_custom_call.1} parent=0
    _
  %s14 = ssub.s32 1, %s12
  %s15 = scalar_select 0, %s14, %s12
  $region1: #{tpu_custom_call.1} parent=0
    #allocation2 [shape = 'u8[8192]{0}', space=vmem, size = 0x2000, scoped, tag = 'input window, operand 0']
    #allocation3 [shape = 's32[2]{0}', space=sflag, size = 0x8, scoped, tag = 'scoped memory for tpu_custom_call.1']
    #allocation4 [shape = 's32[2]{0}', space=sflag, size = 0x8, scoped, tag = 'scoped memory for tpu_custom_call.1']
    #allocation5 [shape = 'u8[131072]{0}', space=vmem, size = 0x20000, scoped, tag = 'input window, operand 1, single buffered']
    #allocation6 [shape = 's32[1]{0}', space=sflag, size = 0x4, scoped, tag = 'scoped memory for tpu_custom_call.1']
    #allocation7 [shape = 'u8[1024]{0}', space=vmem, size = 0x400, scoped, tag = 'input window, operand 2, single buffered']
    #allocation8 [shape = 'u8[262144]{0}', space=vmem, size = 0x40000, scoped, tag = 'input window, operand 3, single buffered']
    #allocation9 [shape = 's32[1]{0}', space=sflag, size = 0x4, scoped, tag = 'scoped memory for tpu_custom_call.1']
    #allocation10 [shape = 'u8[1024]{0}', space=vmem, size = 0x400, scoped, tag = 'input window, operand 4, single buffered']
    #allocation11 [shape = 'u8[98304]{0}', space=vmem, size = 0x18000, scoped, tag = 'input window, operand 5, single buffered']
    #allocation12 [shape = 's32[1]{0}', space=sflag, size = 0x4, scoped, tag = 'scoped memory for tpu_custom_call.1']
    #allocation13 [shape = 'u8[512]{0}', space=vmem, size = 0x400, scoped, tag = 'input window, operand 6, single buffered']
    #allocation14 [shape = 'u8[65536]{0}', space=vmem, size = 0x10000, scoped, tag = 'input window, operand 7, single buffered']
    #allocation15 [shape = 's32[1]{0}', space=sflag, size = 0x4, scoped, tag = 'scoped memory for tpu_custom_call.1']
    #allocation16 [shape = 'u8[512]{0}', space=vmem, size = 0x400, scoped, tag = 'input window, operand 8, single buffered']
    #allocation17 [shape = 'u8[65536]{0}', space=vmem, size = 0x10000, scoped, tag = 'input window, operand 9, single buffered']
    #allocation18 [shape = 's32[1]{0}', space=sflag, size = 0x4, scoped, tag = 'scoped memory for tpu_custom_call.1']
    #allocation19 [shape = 'u8[512]{0}', space=vmem, size = 0x400, scoped, tag = 'input window, operand 10, single buffered']
    #allocation20 [shape = 'u8[8192]{0}', space=vmem, size = 0x2000, scoped, tag = 'output window, operand 0']
    %16 = vsyncpa [#allocation3], 0
    %s17 = scalar_lea.sflag [#allocation3], 1
    %18 = vsyncpa %s17, 0
    %19 = vsyncpa [#allocation6], 0
    %20 = vsyncpa [#allocation9], 0
    %21 = vsyncpa [#allocation12], 0
    %22 = vsyncpa [#allocation15], 0
    %23 = vsyncpa [#allocation18], 0
    %24 = vsyncpa [#allocation4], 0
    %s25 = scalar_lea.sflag [#allocation4], 1
    %26 = vsyncpa %s25, 0
    loop: start=0, step=1, limit=4
    $region2: #{tpu_custom_call.1} parent=1 // loop_pre_header
      _
    $region3: #{tpu_custom_call.1} parent=1 // loop_header
      %s28 = sphi 0, %s32
      %p29 = scmp.ge.s32.totalorder %s28, 4
      %s38 = sphi 0, %s40
      %s41 = sphi 0, %s38
      %s42 = sphi 0, %s41
      %s58 = sphi 0, %s42
      %s62 = sphi 0, %s62
      %s64 = sphi 0, %s62
      %s65 = sphi 0, %s64
      %s79 = sphi 0, %s65
      %s83 = sphi 0, %s83
      %s85 = sphi 0, %s83
      %s86 = sphi 0, %s85
      %s100 = sphi 0, %s86
      %s104 = sphi 0, %s104
      %s106 = sphi 0, %s104
      %s107 = sphi 0, %s106
      %s121 = sphi 0, %s107
      %s125 = sphi 0, %s125
      %s127 = sphi 0, %s125
      %s128 = sphi 0, %s127
      %s142 = sphi 0, %s128
      %s146 = sphi 0, %s146
      %s148 = sphi 0, %s146
      %s149 = sphi 0, %s148
      %s163 = sphi 0, %s149
      %s167 = sphi 0, %s167
      %s169 = sphi 0, %s167
      %s170 = sphi 0, %s169
      %s184 = sphi 0, %s170
      %s188 = sphi 0, %s188
      %s190 = sphi 0, %s188
      %s191 = sphi 0, %s190
      %s205 = sphi 0, %s191
      %s209 = sphi 0, %s209
      %s211 = sphi 0, %s209
      %s212 = sphi 0, %s211
      %s226 = sphi 0, %s212
      %s230 = sphi 0, %s230
      %s232 = sphi 0, %s230
      %s233 = sphi 0, %s232
      %s247 = sphi 0, %s233
      %s251 = sphi 0, %s251
      %s253 = sphi 0, %s251
      %s254 = sphi 0, %s253
      %s268 = sphi 0, %s254
      %s274 = sphi 0, %s276
      %s277 = sphi 0, %s274
      %s278 = sphi 0, %s277
      %s294 = sphi 0, %s278
    $region4: #{tpu_custom_call.1} parent=1 // loop_header_branch
      %31 = sbr.rel (%p29) target = $region8
    $region5: #{tpu_custom_call.1} parent=1 // loop_body
      %s33 = ssub.s32 %s28, 1
      %s34 = ssub.s32 %s28, 2
      %s35 = sadd.s32 %s28, 1
      %s36 = ssub.s32 %s28, %s35
      %p37 = scmp.eq.s32.totalorder %s36, 0
      %s39 = sadd.s32 %s38, 1
      %s40 = scalar_select %p37, %s38, %s39
      %p43 = pneg %p37
      %p44 = scmp.eq.s32.totalorder %s28, 1
      %p45 = por %p43, %p44
      %p46 = scmp.ne.s32.totalorder %s38, %s41
      %p47 = scmp.eq.s32.totalorder %s28, 0
      %p48 = por %p46, %p47
      %p49 = scmp.ne.s32.totalorder %s38, %s41
      %p50 = scmp.eq.s32.totalorder %s33, 1
      %p51 = por %p49, %p50
      %p52 = scmp.ne.s32.totalorder %s41, %s42
      %p53 = scmp.eq.s32.totalorder %s33, 0
      %p54 = por %p52, %p53
      %p55 = scmp.ne.s32.totalorder %s41, %s42
      %p56 = scmp.eq.s32.totalorder %s34, 1
      %p57 = por %p55, %p56
      %p59 = scmp.ne.s32.totalorder %s42, %s58
      %p60 = scmp.eq.s32.totalorder %s34, 0
      %p61 = por %p59, %p60
      %s63 = sadd.s32 %s62, 1
      %p66 = scmp.eq.s32.totalorder %s28, 1
      %p67 = scmp.ne.s32.totalorder %s62, %s64
      %p68 = scmp.eq.s32.totalorder %s28, 0
      %p69 = por %p67, %p68
      %p70 = scmp.ne.s32.totalorder %s62, %s64
      %p71 = scmp.eq.s32.totalorder %s33, 1
      %p72 = por %p70, %p71
      %p73 = scmp.ne.s32.totalorder %s64, %s65
      %p74 = scmp.eq.s32.totalorder %s33, 0
      %p75 = por %p73, %p74
      %p76 = scmp.ne.s32.totalorder %s64, %s65
      %p77 = scmp.eq.s32.totalorder %s34, 1
      %p78 = por %p76, %p77
      %p80 = scmp.ne.s32.totalorder %s65, %s79
      %p81 = scmp.eq.s32.totalorder %s34, 0
      %p82 = por %p80, %p81
      %s84 = sadd.s32 %s83, 1
      %p87 = scmp.eq.s32.totalorder %s28, 1
      %p88 = scmp.ne.s32.totalorder %s83, %s85
      %p89 = scmp.eq.s32.totalorder %s28, 0
      %p90 = por %p88, %p89
      %p91 = scmp.ne.s32.totalorder %s83, %s85
      %p92 = scmp.eq.s32.totalorder %s33, 1
      %p93 = por %p91, %p92
      %p94 = scmp.ne.s32.totalorder %s85, %s86
      %p95 = scmp.eq.s32.totalorder %s33, 0
      %p96 = por %p94, %p95
      %p97 = scmp.ne.s32.totalorder %s85, %s86
      %p98 = scmp.eq.s32.totalorder %s34, 1
      %p99 = por %p97, %p98
      %p101 = scmp.ne.s32.totalorder %s86, %s100
      %p102 = scmp.eq.s32.totalorder %s34, 0
      %p103 = por %p101, %p102
      %s105 = sadd.s32 %s104, 1
      %p108 = scmp.eq.s32.totalorder %s28, 1
      %p109 = scmp.ne.s32.totalorder %s104, %s106
      %p110 = scmp.eq.s32.totalorder %s28, 0
      %p111 = por %p109, %p110
      %p112 = scmp.ne.s32.totalorder %s104, %s106
      %p113 = scmp.eq.s32.totalorder %s33, 1
      %p114 = por %p112, %p113
      %p115 = scmp.ne.s32.totalorder %s106, %s107
      %p116 = scmp.eq.s32.totalorder %s33, 0
      %p117 = por %p115, %p116
      %p118 = scmp.ne.s32.totalorder %s106, %s107
      %p119 = scmp.eq.s32.totalorder %s34, 1
      %p120 = por %p118, %p119
      %p122 = scmp.ne.s32.totalorder %s107, %s121
      %p123 = scmp.eq.s32.totalorder %s34, 0
      %p124 = por %p122, %p123
      %s126 = sadd.s32 %s125, 1
      %p129 = scmp.eq.s32.totalorder %s28, 1
      %p130 = scmp.ne.s32.totalorder %s125, %s127
      %p131 = scmp.eq.s32.totalorder %s28, 0
      %p132 = por %p130, %p131
      %p133 = scmp.ne.s32.totalorder %s125, %s127
      %p134 = scmp.eq.s32.totalorder %s33, 1
      %p135 = por %p133, %p134
      %p136 = scmp.ne.s32.totalorder %s127, %s128
      %p137 = scmp.eq.s32.totalorder %s33, 0
      %p138 = por %p136, %p137
      %p139 = scmp.ne.s32.totalorder %s127, %s128
      %p140 = scmp.eq.s32.totalorder %s34, 1
      %p141 = por %p139, %p140
      %p143 = scmp.ne.s32.totalorder %s128, %s142
      %p144 = scmp.eq.s32.totalorder %s34, 0
      %p145 = por %p143, %p144
      %s147 = sadd.s32 %s146, 1
      %p150 = scmp.eq.s32.totalorder %s28, 1
      %p151 = scmp.ne.s32.totalorder %s146, %s148
      %p152 = scmp.eq.s32.totalorder %s28, 0
      %p153 = por %p151, %p152
      %p154 = scmp.ne.s32.totalorder %s146, %s148
      %p155 = scmp.eq.s32.totalorder %s33, 1
      %p156 = por %p154, %p155
      %p157 = scmp.ne.s32.totalorder %s148, %s149
      %p158 = scmp.eq.s32.totalorder %s33, 0
      %p159 = por %p157, %p158
      %p160 = scmp.ne.s32.totalorder %s148, %s149
      %p161 = scmp.eq.s32.totalorder %s34, 1
      %p162 = por %p160, %p161
      %p164 = scmp.ne.s32.totalorder %s149, %s163
      %p165 = scmp.eq.s32.totalorder %s34, 0
      %p166 = por %p164, %p165
      %s168 = sadd.s32 %s167, 1
      %p171 = scmp.eq.s32.totalorder %s28, 1
      %p172 = scmp.ne.s32.totalorder %s167, %s169
      %p173 = scmp.eq.s32.totalorder %s28, 0
      %p174 = por %p172, %p173
      %p175 = scmp.ne.s32.totalorder %s167, %s169
      %p176 = scmp.eq.s32.totalorder %s33, 1
      %p177 = por %p175, %p176
      %p178 = scmp.ne.s32.totalorder %s169, %s170
      %p179 = scmp.eq.s32.totalorder %s33, 0
      %p180 = por %p178, %p179
      %p181 = scmp.ne.s32.totalorder %s169, %s170
      %p182 = scmp.eq.s32.totalorder %s34, 1
      %p183 = por %p181, %p182
      %p185 = scmp.ne.s32.totalorder %s170, %s184
      %p186 = scmp.eq.s32.totalorder %s34, 0
      %p187 = por %p185, %p186
      %s189 = sadd.s32 %s188, 1
      %p192 = scmp.eq.s32.totalorder %s28, 1
      %p193 = scmp.ne.s32.totalorder %s188, %s190
      %p194 = scmp.eq.s32.totalorder %s28, 0
      %p195 = por %p193, %p194
      %p196 = scmp.ne.s32.totalorder %s188, %s190
      %p197 = scmp.eq.s32.totalorder %s33, 1
      %p198 = por %p196, %p197
      %p199 = scmp.ne.s32.totalorder %s190, %s191
      %p200 = scmp.eq.s32.totalorder %s33, 0
      %p201 = por %p199, %p200
      %p202 = scmp.ne.s32.totalorder %s190, %s191
      %p203 = scmp.eq.s32.totalorder %s34, 1
      %p204 = por %p202, %p203
      %p206 = scmp.ne.s32.totalorder %s191, %s205
      %p207 = scmp.eq.s32.totalorder %s34, 0
      %p208 = por %p206, %p207
      %s210 = sadd.s32 %s209, 1
      %p213 = scmp.eq.s32.totalorder %s28, 1
      %p214 = scmp.ne.s32.totalorder %s209, %s211
      %p215 = scmp.eq.s32.totalorder %s28, 0
      %p216 = por %p214, %p215
      %p217 = scmp.ne.s32.totalorder %s209, %s211
      %p218 = scmp.eq.s32.totalorder %s33, 1
      %p219 = por %p217, %p218
      %p220 = scmp.ne.s32.totalorder %s211, %s212
      %p221 = scmp.eq.s32.totalorder %s33, 0
      %p222 = por %p220, %p221
      %p223 = scmp.ne.s32.totalorder %s211, %s212
      %p224 = scmp.eq.s32.totalorder %s34, 1
      %p225 = por %p223, %p224
      %p227 = scmp.ne.s32.totalorder %s212, %s226
      %p228 = scmp.eq.s32.totalorder %s34, 0
      %p229 = por %p227, %p228
      %s231 = sadd.s32 %s230, 1
      %p234 = scmp.eq.s32.totalorder %s28, 1
      %p235 = scmp.ne.s32.totalorder %s230, %s232
      %p236 = scmp.eq.s32.totalorder %s28, 0
      %p237 = por %p235, %p236
      %p238 = scmp.ne.s32.totalorder %s230, %s232
      %p239 = scmp.eq.s32.totalorder %s33, 1
      %p240 = por %p238, %p239
      %p241 = scmp.ne.s32.totalorder %s232, %s233
      %p242 = scmp.eq.s32.totalorder %s33, 0
      %p243 = por %p241, %p242
      %p244 = scmp.ne.s32.totalorder %s232, %s233
      %p245 = scmp.eq.s32.totalorder %s34, 1
      %p246 = por %p244, %p245
      %p248 = scmp.ne.s32.totalorder %s233, %s247
      %p249 = scmp.eq.s32.totalorder %s34, 0
      %p250 = por %p248, %p249
      %s252 = sadd.s32 %s251, 1
      %p255 = scmp.eq.s32.totalorder %s28, 1
      %p256 = scmp.ne.s32.totalorder %s251, %s253
      %p257 = scmp.eq.s32.totalorder %s28, 0
      %p258 = por %p256, %p257
      %p259 = scmp.ne.s32.totalorder %s251, %s253
      %p260 = scmp.eq.s32.totalorder %s33, 1
      %p261 = por %p259, %p260
      %p262 = scmp.ne.s32.totalorder %s253, %s254
      %p263 = scmp.eq.s32.totalorder %s33, 0
      %p264 = por %p262, %p263
      %p265 = scmp.ne.s32.totalorder %s253, %s254
      %p266 = scmp.eq.s32.totalorder %s34, 1
      %p267 = por %p265, %p266
      %p269 = scmp.ne.s32.totalorder %s254, %s268
      %p270 = scmp.eq.s32.totalorder %s34, 0
      %p271 = por %p269, %p270
      %s272 = ssub.s32 %s28, %s35
      %p273 = scmp.eq.s32.totalorder %s272, 0
      %s275 = sadd.s32 %s274, 1
      %s276 = scalar_select %p273, %s274, %s275
      %p279 = pneg %p273
      %p280 = scmp.eq.s32.totalorder %s28, 1
      %p281 = por %p279, %p280
      %p282 = scmp.ne.s32.totalorder %s274, %s277
      %p283 = scmp.eq.s32.totalorder %s28, 0
      %p284 = por %p282, %p283
      %p285 = scmp.ne.s32.totalorder %s274, %s277
      %p286 = scmp.eq.s32.totalorder %s33, 1
      %p287 = por %p285, %p286
      %p288 = scmp.ne.s32.totalorder %s277, %s278
      %p289 = scmp.eq.s32.totalorder %s33, 0
      %p290 = por %p288, %p289
      %p291 = scmp.ne.s32.totalorder %s277, %s278
      %p292 = scmp.eq.s32.totalorder %s34, 1
      %p293 = por %p291, %p292
      %p295 = scmp.ne.s32.totalorder %s278, %s294
      %p296 = scmp.eq.s32.totalorder %s34, 0
      %p297 = por %p295, %p296
      %p298 = scmp.le.s32.totalorder 1, %s28
      %p299 = scmp.lt.s32.totalorder %s28, 3
      %p300 = pnand %p298, %p299
      %p301 = pneg %p300
      // Predicated region
      $region9: #{tpu_custom_call.1} parent=5 // pred_check
        _
      $region10: #{tpu_custom_call.1} parent=5 // pred_check_branch
        %303 = sbr.rel (%p300) target = $region12
      $region11: #{tpu_custom_call.1} parent=5 // pred_region
        %s304 = ssub.s32 %s28, 1
        // Predicated region
        $region13: #{tpu_custom_call.1} parent=11 // pred_check
          %p305 = pneg %p75
        $region14: #{tpu_custom_call.1} parent=11 // pred_check_branch
          %307 = sbr.rel (%p305) target = $region16
        $region15: #{tpu_custom_call.1} parent=11 // pred_region
          %s309 = ssub.s32 4096, 4096
          %310 = vsyncadd [#allocation6], %s309
          %s311 = sshll.u32 [#allocation5], 4
          %s312 = int_to_ptr.vmem [resolvable:$true] %s311
          %317 = dma.hbm_to_vmem [thread:$0]  %s1, 4096, %s312, [#allocation6], 256, 256, 16
        $region16: #{tpu_custom_call.1} parent=11 // pred_fallthru
          _
        // Predicated region
        $region17: #{tpu_custom_call.1} parent=11 // pred_check
          %p318 = pneg %p96
        $region18: #{tpu_custom_call.1} parent=11 // pred_check_branch
          %320 = sbr.rel (%p318) target = $region20
        $region19: #{tpu_custom_call.1} parent=11 // pred_region
          %s322 = ssub.s32 32, 32
          %323 = vsyncadd [#allocation6], %s322
          %s325 = sshll.u32 [#allocation7], 4
          %s326 = int_to_ptr.vmem [resolvable:$true] %s325
          %328 = dma.hbm_to_vmem [thread:$0]  %s2, 32, %s326, [#allocation6]
        $region20: #{tpu_custom_call.1} parent=11 // pred_fallthru
          _
        // Predicated region
        $region21: #{tpu_custom_call.1} parent=11 // pred_check
          %p329 = pneg %p117
        $region22: #{tpu_custom_call.1} parent=11 // pred_check_branch
          %331 = sbr.rel (%p329) target = $region24
        $region23: #{tpu_custom_call.1} parent=11 // pred_region
          %s333 = ssub.s32 8192, 8192
          %334 = vsyncadd [#allocation9], %s333
          %s335 = sshll.u32 [#allocation8], 4
          %s336 = int_to_ptr.vmem [resolvable:$true] %s335
          %341 = dma.hbm_to_vmem [thread:$0]  %s3, 8192, %s336, [#allocation9], 256, 256, 16
        $region24: #{tpu_custom_call.1} parent=11 // pred_fallthru
          _
        // Predicated region
        $region25: #{tpu_custom_call.1} parent=11 // pred_check
          %p342 = pneg %p138
        $region26: #{tpu_custom_call.1} parent=11 // pred_check_branch
          %344 = sbr.rel (%p342) target = $region28
        $region27: #{tpu_custom_call.1} parent=11 // pred_region
          %s346 = ssub.s32 32, 32
          %347 = vsyncadd [#allocation9], %s346
          %s349 = sshll.u32 [#allocation10], 4
          %s350 = int_to_ptr.vmem [resolvable:$true] %s349
          %352 = dma.hbm_to_vmem [thread:$0]  %s4, 32, %s350, [#allocation9]
        $region28: #{tpu_custom_call.1} parent=11 // pred_fallthru
          _
        // Predicated region
        $region29: #{tpu_custom_call.1} parent=11 // pred_check
          %p353 = pneg %p159
        $region30: #{tpu_custom_call.1} parent=11 // pred_check_branch
          %355 = sbr.rel (%p353) target = $region32
        $region31: #{tpu_custom_call.1} parent=11 // pred_region
          %s357 = ssub.s32 3072, 3072
          %358 = vsyncadd [#allocation12], %s357
          %s359 = sshll.u32 [#allocation11], 4
          %s360 = int_to_ptr.vmem [resolvable:$true] %s359
          %365 = dma.hbm_to_vmem [thread:$0]  %s5, 3072, %s360, [#allocation12], 128, 128, 8
        $region32: #{tpu_custom_call.1} parent=11 // pred_fallthru
          _
        // Predicated region
        $region33: #{tpu_custom_call.1} parent=11 // pred_check
          %p366 = pneg %p180
        $region34: #{tpu_custom_call.1} parent=11 // pred_check_branch
          %368 = sbr.rel (%p366) target = $region36
        $region35: #{tpu_custom_call.1} parent=11 // pred_region
          %s370 = ssub.s32 16, 16
          %371 = vsyncadd [#allocation12], %s370
          %s373 = sshll.u32 [#allocation13], 4
          %s374 = int_to_ptr.vmem [resolvable:$true] %s373
          %376 = dma.hbm_to_vmem [thread:$0]  %s6, 16, %s374, [#allocation12]
        $region36: #{tpu_custom_call.1} parent=11 // pred_fallthru
          _
        // Predicated region
        $region37: #{tpu_custom_call.1} parent=11 // pred_check
          %p377 = pneg %p201
        $region38: #{tpu_custom_call.1} parent=11 // pred_check_branch
          %379 = sbr.rel (%p377) target = $region40
        $region39: #{tpu_custom_call.1} parent=11 // pred_region
          %s381 = ssub.s32 2048, 2048
          %382 = vsyncadd [#allocation15], %s381
          %s383 = sshll.u32 [#allocation14], 4
          %s384 = int_to_ptr.vmem [resolvable:$true] %s383
          %389 = dma.hbm_to_vmem [thread:$0]  %s7, 2048, %s384, [#allocation15], 128, 128, 8
        $region40: #{tpu_custom_call.1} parent=11 // pred_fallthru
          _
        // Predicated region
        $region41: #{tpu_custom_call.1} parent=11 // pred_check
          %p390 = pneg %p222
        $region42: #{tpu_custom_call.1} parent=11 // pred_check_branch
          %392 = sbr.rel (%p390) target = $region44
        $region43: #{tpu_custom_call.1} parent=11 // pred_region
          %s394 = ssub.s32 16, 16
          %395 = vsyncadd [#allocation15], %s394
          %s397 = sshll.u32 [#allocation16], 4
          %s398 = int_to_ptr.vmem [resolvable:$true] %s397
          %400 = dma.hbm_to_vmem [thread:$0]  %s8, 16, %s398, [#allocation15]
        $region44: #{tpu_custom_call.1} parent=11 // pred_fallthru
          _
        // Predicated region
        $region45: #{tpu_custom_call.1} parent=11 // pred_check
          %p401 = pneg %p243
        $region46: #{tpu_custom_call.1} parent=11 // pred_check_branch
          %403 = sbr.rel (%p401) target = $region48
        $region47: #{tpu_custom_call.1} parent=11 // pred_region
          %s405 = ssub.s32 2048, 2048
          %406 = vsyncadd [#allocation18], %s405
          %s407 = sshll.u32 [#allocation17], 4
          %s408 = int_to_ptr.vmem [resolvable:$true] %s407
          %413 = dma.hbm_to_vmem [thread:$0]  %s9, 2048, %s408, [#allocation18], 128, 128, 8
        $region48: #{tpu_custom_call.1} parent=11 // pred_fallthru
          _
        // Predicated region
        $region49: #{tpu_custom_call.1} parent=11 // pred_check
          %p414 = pneg %p264
        $region50: #{tpu_custom_call.1} parent=11 // pred_check_branch
          %416 = sbr.rel (%p414) target = $region52
        $region51: #{tpu_custom_call.1} parent=11 // pred_region
          %s418 = ssub.s32 16, 16
          %419 = vsyncadd [#allocation18], %s418
          %s421 = sshll.u32 [#allocation19], 4
          %s422 = int_to_ptr.vmem [resolvable:$true] %s421
          %424 = dma.hbm_to_vmem [thread:$0]  %s10, 16, %s422, [#allocation18]
        $region52: #{tpu_custom_call.1} parent=11 // pred_fallthru
          _
      $region12: #{tpu_custom_call.1} parent=5 // pred_fallthru
        _
      %p425 = scmp.lt.s32.totalorder %s28, 2
      // Predicated region
      $region53: #{tpu_custom_call.1} parent=5 // pred_check
        %p426 = pneg %p425
      $region54: #{tpu_custom_call.1} parent=5 // pred_check_branch
        %428 = sbr.rel (%p426) target = $region56
      $region55: #{tpu_custom_call.1} parent=5 // pred_region
        // Predicated region
        $region57: #{tpu_custom_call.1} parent=55 // pred_check
          %p429 = pneg %p48
        $region58: #{tpu_custom_call.1} parent=55 // pred_check_branch
          %431 = sbr.rel (%p429) target = $region60
        $region59: #{tpu_custom_call.1} parent=55 // pred_region
          %s432 = sand.u32 %s38, 1
          %s433 = scalar_lea.sflag [#allocation3], %s432
          %s434 = sand.u32 %s38, 1
          %s435 = smul.addr %s434, 8
          %s436 = scalar_lea.vmem [#allocation2], %s435
          %s438 = ssub.s32 128, 128
          %439 = vsyncadd %s433, %s438
          %s440 = smul.addr %s28, 128
          %s441 = scalar_lea.hbm %s0, %s440
          %s443 = sshll.u32 %s436, 4
          %s444 = int_to_ptr.vmem [resolvable:$true] %s443
          %446 = dma.hbm_to_vmem [thread:$0]  %s441, 128, %s444, %s433
        $region60: #{tpu_custom_call.1} parent=55 // pred_fallthru
          _
      $region56: #{tpu_custom_call.1} parent=5 // pred_fallthru
        _
      %p447 = scmp.le.s32.totalorder 1, %s28
      %p448 = scmp.lt.s32.totalorder %s28, 3
      %p449 = pnand %p447, %p448
      %p450 = pneg %p449
      // Predicated region
      $region61: #{tpu_custom_call.1} parent=5 // pred_check
        _
      $region62: #{tpu_custom_call.1} parent=5 // pred_check_branch
        %452 = sbr.rel (%p449) target = $region64
      $region63: #{tpu_custom_call.1} parent=5 // pred_region
        %s453 = ssub.s32 %s28, 1
        %s454 = sand.u32 %s41, 1
        %s455 = scalar_lea.sflag [#allocation3], %s454
        %s456 = sand.u32 %s41, 1
        %s457 = smul.addr %s456, 8
        %s458 = scalar_lea.vmem [#allocation2], %s457
        // Predicated region
        $region65: #{tpu_custom_call.1} parent=63 // pred_check
          %p459 = pneg %p54
        $region66: #{tpu_custom_call.1} parent=63 // pred_check_branch
          %461 = sbr.rel (%p459) target = $region68
        $region67: #{tpu_custom_call.1} parent=63 // pred_region
          %462 = dma.done %s455, 128
        $region68: #{tpu_custom_call.1} parent=63 // pred_fallthru
          _
        // Predicated region
        $region69: #{tpu_custom_call.1} parent=63 // pred_check
          %p463 = pneg %p75
        $region70: #{tpu_custom_call.1} parent=63 // pred_check_branch
          %465 = sbr.rel (%p463) target = $region72
        $region71: #{tpu_custom_call.1} parent=63 // pred_region
          %466 = dma.done [#allocation6], 4096
        $region72: #{tpu_custom_call.1} parent=63 // pred_fallthru
          _
        // Predicated region
        $region73: #{tpu_custom_call.1} parent=63 // pred_check
          %p467 = pneg %p96
        $region74: #{tpu_custom_call.1} parent=63 // pred_check_branch
          %469 = sbr.rel (%p467) target = $region76
        $region75: #{tpu_custom_call.1} parent=63 // pred_region
          %470 = dma.done [#allocation6], 32
        $region76: #{tpu_custom_call.1} parent=63 // pred_fallthru
          _
        // Predicated region
        $region77: #{tpu_custom_call.1} parent=63 // pred_check
          %p471 = pneg %p117
        $region78: #{tpu_custom_call.1} parent=63 // pred_check_branch
          %473 = sbr.rel (%p471) target = $region80
        $region79: #{tpu_custom_call.1} parent=63 // pred_region
          %474 = dma.done [#allocation9], 8192
        $region80: #{tpu_custom_call.1} parent=63 // pred_fallthru
          _
        // Predicated region
        $region81: #{tpu_custom_call.1} parent=63 // pred_check
          %p475 = pneg %p138
        $region82: #{tpu_custom_call.1} parent=63 // pred_check_branch
          %477 = sbr.rel (%p475) target = $region84
        $region83: #{tpu_custom_call.1} parent=63 // pred_region
          %478 = dma.done [#allocation9], 32
        $region84: #{tpu_custom_call.1} parent=63 // pred_fallthru
          _
        // Predicated region
        $region85: #{tpu_custom_call.1} parent=63 // pred_check
          %p479 = pneg %p159
        $region86: #{tpu_custom_call.1} parent=63 // pred_check_branch
          %481 = sbr.rel (%p479) target = $region88
        $region87: #{tpu_custom_call.1} parent=63 // pred_region
          %482 = dma.done [#allocation12], 3072
        $region88: #{tpu_custom_call.1} parent=63 // pred_fallthru
          _
        // Predicated region
        $region89: #{tpu_custom_call.1} parent=63 // pred_check
          %p483 = pneg %p180
        $region90: #{tpu_custom_call.1} parent=63 // pred_check_branch
          %485 = sbr.rel (%p483) target = $region92
        $region91: #{tpu_custom_call.1} parent=63 // pred_region
          %486 = dma.done [#allocation12], 16
        $region92: #{tpu_custom_call.1} parent=63 // pred_fallthru
          _
        // Predicated region
        $region93: #{tpu_custom_call.1} parent=63 // pred_check
          %p487 = pneg %p201
        $region94: #{tpu_custom_call.1} parent=63 // pred_check_branch
          %489 = sbr.rel (%p487) target = $region96
        $region95: #{tpu_custom_call.1} parent=63 // pred_region
          %490 = dma.done [#allocation15], 2048
        $region96: #{tpu_custom_call.1} parent=63 // pred_fallthru
          _
        // Predicated region
        $region97: #{tpu_custom_call.1} parent=63 // pred_check
          %p491 = pneg %p222
        $region98: #{tpu_custom_call.1} parent=63 // pred_check_branch
          %493 = sbr.rel (%p491) target = $region100
        $region99: #{tpu_custom_call.1} parent=63 // pred_region
          %494 = dma.done [#allocation15], 16
        $region100: #{tpu_custom_call.1} parent=63 // pred_fallthru
          _
        // Predicated region
        $region101: #{tpu_custom_call.1} parent=63 // pred_check
          %p495 = pneg %p243
        $region102: #{tpu_custom_call.1} parent=63 // pred_check_branch
          %497 = sbr.rel (%p495) target = $region104
        $region103: #{tpu_custom_call.1} parent=63 // pred_region
          %498 = dma.done [#allocation18], 2048
        $region104: #{tpu_custom_call.1} parent=63 // pred_fallthru
          _
        // Predicated region
        $region105: #{tpu_custom_call.1} parent=63 // pred_check
          %p499 = pneg %p264
        $region106: #{tpu_custom_call.1} parent=63 // pred_check_branch
          %501 = sbr.rel (%p499) target = $region108
        $region107: #{tpu_custom_call.1} parent=63 // pred_region
          %502 = dma.done [#allocation18], 16
        $region108: #{tpu_custom_call.1} parent=63 // pred_fallthru
          _
        %s503 = sand.u32 %s41, 1
        %s504 = scalar_lea.sflag [#allocation3], %s503
        %s505 = sand.u32 %s41, 1
        %s506 = smul.addr %s505, 8
        %s507 = scalar_lea.vmem [#allocation2], %s506
        %p508 = pneg %p54
        %p509 = pneg %p51
        %p510 = pneg %p75
        %p511 = pneg %p72
        %p512 = pneg %p96
        %p513 = pneg %p93
        %p514 = pneg %p117
        %p515 = pneg %p114
        %p516 = pneg %p138
        %p517 = pneg %p135
        %p518 = pneg %p159
        %p519 = pneg %p156
        %p520 = pneg %p180
        %p521 = pneg %p177
        %p522 = pneg %p201
        %p523 = pneg %p198
        %p524 = pneg %p222
        %p525 = pneg %p219
        %p526 = pneg %p243
        %p527 = pneg %p240
        %p528 = pneg %p264
        %p529 = pneg %p261
        %p530 = pneg %p290
        %p531 = pneg %p287
        %s532 = sand.u32 %s277, 1
        %s533 = scalar_lea.sflag [#allocation4], %s532
        %s534 = sand.u32 %s277, 1
        %s535 = smul.addr %s534, 8
        %s536 = scalar_lea.vmem [#allocation20], %s535
        %v537 = vld [vmem:[%s458] sm:$0xff]
        %v538 = vld [vmem:[#allocation5] sm:$0xff]
        %v539 = vld [vmem:[#allocation5 + $0x8] sm:$0xff]
        %v540 = vld [vmem:[#allocation5 + $0x10] sm:$0xff]
        %v541 = vld [vmem:[#allocation5 + $0x18] sm:$0xff]
        %v542 = vld [vmem:[#allocation5 + $0x20] sm:$0xff]
        %v543 = vld [vmem:[#allocation5 + $0x28] sm:$0xff]
        %v544 = vld [vmem:[#allocation5 + $0x30] sm:$0xff]
        %v545 = vld [vmem:[#allocation5 + $0x38] sm:$0xff]
        %v546 = vld [vmem:[#allocation5 + $0x40] sm:$0xff]
        %v547 = vld [vmem:[#allocation5 + $0x48] sm:$0xff]
        %v548 = vld [vmem:[#allocation5 + $0x50] sm:$0xff]
        %v549 = vld [vmem:[#allocation5 + $0x58] sm:$0xff]
        %v550 = vld [vmem:[#allocation5 + $0x60] sm:$0xff]
        %v551 = vld [vmem:[#allocation5 + $0x68] sm:$0xff]
        %v552 = vld [vmem:[#allocation5 + $0x70] sm:$0xff]
        %v553 = vld [vmem:[#allocation5 + $0x78] sm:$0xff]
        %v554 = vld [vmem:[#allocation5 + $0x80] sm:$0xff]
        %v555 = vld [vmem:[#allocation5 + $0x88] sm:$0xff]
        %v556 = vld [vmem:[#allocation5 + $0x90] sm:$0xff]
        %v557 = vld [vmem:[#allocation5 + $0x98] sm:$0xff]
        %v558 = vld [vmem:[#allocation5 + $0xa0] sm:$0xff]
        %v559 = vld [vmem:[#allocation5 + $0xa8] sm:$0xff]
        %v560 = vld [vmem:[#allocation5 + $0xb0] sm:$0xff]
        %v561 = vld [vmem:[#allocation5 + $0xb8] sm:$0xff]
        %v562 = vld [vmem:[#allocation5 + $0xc0] sm:$0xff]
        %v563 = vld [vmem:[#allocation5 + $0xc8] sm:$0xff]
        %v564 = vld [vmem:[#allocation5 + $0xd0] sm:$0xff]
        %v565 = vld [vmem:[#allocation5 + $0xd8] sm:$0xff]
        %v566 = vld [vmem:[#allocation5 + $0xe0] sm:$0xff]
        %v567 = vld [vmem:[#allocation5 + $0xe8] sm:$0xff]
        %v568 = vld [vmem:[#allocation5 + $0xf0] sm:$0xff]
        %v569 = vld [vmem:[#allocation5 + $0xf8] sm:$0xff]
        %v570 = vld [vmem:[#allocation7] sm:$0x3]
        %v572 = vlaneseq
        %v573 = vshrl.u32 %v572, 7
        %v574 = vsub.s32 0, %v573
        %v575 = vrot.slane %v570, %v574
        %v576 = vlaneseq
        %v577 = vshrl.u32 %v576, 7
        %v578 = vsub.s32 1, %v577
        %v579 = vrot.slane %v570, %v578
        %582 = vmatprep.subr.mxu0 %v539
        %583 = vmatpush1.msra.mxu0 %v538
        %584 = vmatprep.subr.mxu0 %v541
        %585 = vmatpush1.msra.mxu0 %v540
        %586 = vmatprep.subr.mxu0 %v543
        %587 = vmatpush1.msra.mxu0 %v542
        %588 = vmatprep.subr.mxu0 %v545
        %589 = vmatpush1.msra.mxu0 %v544
        %590 = vmatprep.subr.mxu0 %v547
        %591 = vmatpush1.msra.mxu0 %v546
        %592 = vmatprep.subr.mxu0 %v549
        %593 = vmatpush1.msra.mxu0 %v548
        %594 = vmatprep.subr.mxu0 %v551
        %595 = vmatpush1.msra.mxu0 %v550
        %596 = vmatprep.subr.mxu0 %v553
        %597 = vmatpush1.msra.mxu0 %v552
        %598 = vmatprep.subr.mxu0 %v555
        %599 = vmatpush1.msra.mxu0 %v554
        %600 = vmatprep.subr.mxu0 %v557
        %601 = vmatpush1.msra.mxu0 %v556
        %602 = vmatprep.subr.mxu0 %v559
        %603 = vmatpush1.msra.mxu0 %v558
        %604 = vmatprep.subr.mxu0 %v561
        %605 = vmatpush1.msra.mxu0 %v560
        %606 = vmatprep.subr.mxu0 %v563
        %607 = vmatpush1.msra.mxu0 %v562
        %608 = vmatprep.subr.mxu0 %v565
        %609 = vmatpush1.msra.mxu0 %v564
        %610 = vmatprep.subr.mxu0 %v567
        %611 = vmatpush1.msra.mxu0 %v566
        %612 = vmatprep.subr.mxu0 %v569
        %613 = vmatpush1.msra.mxu0 %v568
        %614 = vmatprep.subr.mxu0 0.0
        %615 = vmatpush1.msra.mxu0 0.0
        %616 = vmatprep.subr.mxu0 0.0
        %617 = vmatpush1.msra.mxu0 0.0
        %618 = vmatprep.subr.mxu0 0.0
        %619 = vmatpush1.msra.mxu0 0.0
        %620 = vmatprep.subr.mxu0 0.0
        %621 = vmatpush1.msra.mxu0 0.0
        %622 = vmatprep.subr.mxu0 0.0
        %623 = vmatpush1.msra.mxu0 0.0
        %624 = vmatprep.subr.mxu0 0.0
        %625 = vmatpush1.msra.mxu0 0.0
        %626 = vmatprep.subr.mxu0 0.0
        %627 = vmatpush1.msra.mxu0 0.0
        %628 = vmatprep.subr.mxu0 0.0
        %629 = vmatpush1.msra.mxu0 0.0
        %630 = vmatprep.subr.mxu0 0.0
        %631 = vmatpush1.msra.mxu0 0.0
        %632 = vmatprep.subr.mxu0 0.0
        %633 = vmatpush1.msra.mxu0 0.0
        %634 = vmatprep.subr.mxu0 0.0
        %635 = vmatpush1.msra.mxu0 0.0
        %636 = vmatprep.subr.mxu0 0.0
        %637 = vmatpush1.msra.mxu0 0.0
        %638 = vmatprep.subr.mxu0 0.0
        %639 = vmatpush1.msra.mxu0 0.0
        %640 = vmatprep.subr.mxu0 0.0
        %641 = vmatpush1.msra.mxu0 0.0
        %642 = vmatprep.subr.mxu0 0.0
        %643 = vmatpush1.msra.mxu0 0.0
        %644 = vmatprep.subr.mxu0 0.0
        %645 = vmatpush1.msra.mxu0 0.0
        %646 = vmatprep.mubr.f32.mxu0 0.0
        %647 = vmatmul.mubr.f32.gmra.mrb[0].mxu0 %v537
        %v648 = vpop.f32.mrb[0].mxu0
        %v649 = vadd.f32 %v575, %v648
        %v650 = vpop.f32.mrb[0].mxu0
        %v651 = vadd.f32 %v579, %v650
        %652 = vdwg.mxu0
        %vm653 = vcmp.gt.f32.partialorder %v649, 0.0
        %vm654 = vcmp.gt.f32.partialorder %v651, 0.0
        %v655 = vmul.f32 %v649, 0.1
        %v656 = vmul.f32 %v651, 0.1
        %v657 = vsel %vm653, %v649, %v655
        %v658 = vsel %vm654, %v651, %v656
        %v659 = vld [vmem:[#allocation8] sm:$0xff]
        %v660 = vld [vmem:[#allocation8 + $0x8] sm:$0xff]
        %v661 = vld [vmem:[#allocation8 + $0x10] sm:$0xff]
        %v662 = vld [vmem:[#allocation8 + $0x18] sm:$0xff]
        %v663 = vld [vmem:[#allocation8 + $0x20] sm:$0xff]
        %v664 = vld [vmem:[#allocation8 + $0x28] sm:$0xff]
        %v665 = vld [vmem:[#allocation8 + $0x30] sm:$0xff]
        %v666 = vld [vmem:[#allocation8 + $0x38] sm:$0xff]
        %v667 = vld [vmem:[#allocation8 + $0x40] sm:$0xff]
        %v668 = vld [vmem:[#allocation8 + $0x48] sm:$0xff]
        %v669 = vld [vmem:[#allocation8 + $0x50] sm:$0xff]
        %v670 = vld [vmem:[#allocation8 + $0x58] sm:$0xff]
        %v671 = vld [vmem:[#allocation8 + $0x60] sm:$0xff]
        %v672 = vld [vmem:[#allocation8 + $0x68] sm:$0xff]
        %v673 = vld [vmem:[#allocation8 + $0x70] sm:$0xff]
        %v674 = vld [vmem:[#allocation8 + $0x78] sm:$0xff]
        %v675 = vld [vmem:[#allocation8 + $0x80] sm:$0xff]
        %v676 = vld [vmem:[#allocation8 + $0x88] sm:$0xff]
        %v677 = vld [vmem:[#allocation8 + $0x90] sm:$0xff]
        %v678 = vld [vmem:[#allocation8 + $0x98] sm:$0xff]
        %v679 = vld [vmem:[#allocation8 + $0xa0] sm:$0xff]
        %v680 = vld [vmem:[#allocation8 + $0xa8] sm:$0xff]
        %v681 = vld [vmem:[#allocation8 + $0xb0] sm:$0xff]
        %v682 = vld [vmem:[#allocation8 + $0xb8] sm:$0xff]
        %v683 = vld [vmem:[#allocation8 + $0xc0] sm:$0xff]
        %v684 = vld [vmem:[#allocation8 + $0xc8] sm:$0xff]
        %v685 = vld [vmem:[#allocation8 + $0xd0] sm:$0xff]
        %v686 = vld [vmem:[#allocation8 + $0xd8] sm:$0xff]
        %v687 = vld [vmem:[#allocation8 + $0xe0] sm:$0xff]
        %v688 = vld [vmem:[#allocation8 + $0xe8] sm:$0xff]
        %v689 = vld [vmem:[#allocation8 + $0xf0] sm:$0xff]
        %v690 = vld [vmem:[#allocation8 + $0xf8] sm:$0xff]
        %v691 = vld [vmem:[#allocation8 + $0x100] sm:$0xff]
        %v692 = vld [vmem:[#allocation8 + $0x108] sm:$0xff]
        %v693 = vld [vmem:[#allocation8 + $0x110] sm:$0xff]
        %v694 = vld [vmem:[#allocation8 + $0x118] sm:$0xff]
        %v695 = vld [vmem:[#allocation8 + $0x120] sm:$0xff]
        %v696 = vld [vmem:[#allocation8 + $0x128] sm:$0xff]
        %v697 = vld [vmem:[#allocation8 + $0x130] sm:$0xff]
        %v698 = vld [vmem:[#allocation8 + $0x138] sm:$0xff]
        %v699 = vld [vmem:[#allocation8 + $0x140] sm:$0xff]
        %v700 = vld [vmem:[#allocation8 + $0x148] sm:$0xff]
        %v701 = vld [vmem:[#allocation8 + $0x150] sm:$0xff]
        %v702 = vld [vmem:[#allocation8 + $0x158] sm:$0xff]
        %v703 = vld [vmem:[#allocation8 + $0x160] sm:$0xff]
        %v704 = vld [vmem:[#allocation8 + $0x168] sm:$0xff]
        %v705 = vld [vmem:[#allocation8 + $0x170] sm:$0xff]
        %v706 = vld [vmem:[#allocation8 + $0x178] sm:$0xff]
        %v707 = vld [vmem:[#allocation8 + $0x180] sm:$0xff]
        %v708 = vld [vmem:[#allocation8 + $0x188] sm:$0xff]
        %v709 = vld [vmem:[#allocation8 + $0x190] sm:$0xff]
        %v710 = vld [vmem:[#allocation8 + $0x198] sm:$0xff]
        %v711 = vld [vmem:[#allocation8 + $0x1a0] sm:$0xff]
        %v712 = vld [vmem:[#allocation8 + $0x1a8] sm:$0xff]
        %v713 = vld [vmem:[#allocation8 + $0x1b0] sm:$0xff]
        %v714 = vld [vmem:[#allocation8 + $0x1b8] sm:$0xff]
        %v715 = vld [vmem:[#allocation8 + $0x1c0] sm:$0xff]
        %v716 = vld [vmem:[#allocation8 + $0x1c8] sm:$0xff]
        %v717 = vld [vmem:[#allocation8 + $0x1d0] sm:$0xff]
        %v718 = vld [vmem:[#allocation8 + $0x1d8] sm:$0xff]
        %v719 = vld [vmem:[#allocation8 + $0x1e0] sm:$0xff]
        %v720 = vld [vmem:[#allocation8 + $0x1e8] sm:$0xff]
        %v721 = vld [vmem:[#allocation8 + $0x1f0] sm:$0xff]
        %v722 = vld [vmem:[#allocation8 + $0x1f8] sm:$0xff]
        %v723 = vld [vmem:[#allocation10] sm:$0x3]
        %v725 = vlaneseq
        %v726 = vshrl.u32 %v725, 7
        %v727 = vsub.s32 0, %v726
        %v728 = vrot.slane %v723, %v727
        %v729 = vlaneseq
        %v730 = vshrl.u32 %v729, 7
        %v731 = vsub.s32 1, %v730
        %v732 = vrot.slane %v723, %v731
        %735 = vmatprep.subr.mxu0 %v660
        %736 = vmatpush1.msra.mxu0 %v659
        %737 = vmatprep.subr.mxu0 %v662
        %738 = vmatpush1.msra.mxu0 %v661
        %739 = vmatprep.subr.mxu0 %v664
        %740 = vmatpush1.msra.mxu0 %v663
        %741 = vmatprep.subr.mxu0 %v666
        %742 = vmatpush1.msra.mxu0 %v665
        %743 = vmatprep.subr.mxu0 %v668
        %744 = vmatpush1.msra.mxu0 %v667
        %745 = vmatprep.subr.mxu0 %v670
        %746 = vmatpush1.msra.mxu0 %v669
        %747 = vmatprep.subr.mxu0 %v672
        %748 = vmatpush1.msra.mxu0 %v671
        %749 = vmatprep.subr.mxu0 %v674
        %750 = vmatpush1.msra.mxu0 %v673
        %751 = vmatprep.subr.mxu0 %v676
        %752 = vmatpush1.msra.mxu0 %v675
        %753 = vmatprep.subr.mxu0 %v678
        %754 = vmatpush1.msra.mxu0 %v677
        %755 = vmatprep.subr.mxu0 %v680
        %756 = vmatpush1.msra.mxu0 %v679
        %757 = vmatprep.subr.mxu0 %v682
        %758 = vmatpush1.msra.mxu0 %v681
        %759 = vmatprep.subr.mxu0 %v684
        %760 = vmatpush1.msra.mxu0 %v683
        %761 = vmatprep.subr.mxu0 %v686
        %762 = vmatpush1.msra.mxu0 %v685
        %763 = vmatprep.subr.mxu0 %v688
        %764 = vmatpush1.msra.mxu0 %v687
        %765 = vmatprep.subr.mxu0 %v690
        %766 = vmatpush1.msra.mxu0 %v689
        %767 = vmatprep.subr.mxu0 %v692
        %768 = vmatpush1.msra.mxu0 %v691
        %769 = vmatprep.subr.mxu0 %v694
        %770 = vmatpush1.msra.mxu0 %v693
        %771 = vmatprep.subr.mxu0 %v696
        %772 = vmatpush1.msra.mxu0 %v695
        %773 = vmatprep.subr.mxu0 %v698
        %774 = vmatpush1.msra.mxu0 %v697
        %775 = vmatprep.subr.mxu0 %v700
        %776 = vmatpush1.msra.mxu0 %v699
        %777 = vmatprep.subr.mxu0 %v702
        %778 = vmatpush1.msra.mxu0 %v701
        %779 = vmatprep.subr.mxu0 %v704
        %780 = vmatpush1.msra.mxu0 %v703
        %781 = vmatprep.subr.mxu0 %v706
        %782 = vmatpush1.msra.mxu0 %v705
        %783 = vmatprep.subr.mxu0 %v708
        %784 = vmatpush1.msra.mxu0 %v707
        %785 = vmatprep.subr.mxu0 %v710
        %786 = vmatpush1.msra.mxu0 %v709
        %787 = vmatprep.subr.mxu0 %v712
        %788 = vmatpush1.msra.mxu0 %v711
        %789 = vmatprep.subr.mxu0 %v714
        %790 = vmatpush1.msra.mxu0 %v713
        %791 = vmatprep.subr.mxu0 %v716
        %792 = vmatpush1.msra.mxu0 %v715
        %793 = vmatprep.subr.mxu0 %v718
        %794 = vmatpush1.msra.mxu0 %v717
        %795 = vmatprep.subr.mxu0 %v720
        %796 = vmatpush1.msra.mxu0 %v719
        %797 = vmatprep.subr.mxu0 %v722
        %798 = vmatpush1.msra.mxu0 %v721
        %799 = vmatprep.mubr.f32.mxu0 %v658
        %800 = vmatmul.mubr.f32.gmra.mrb[0].mxu0 %v657
        %v801 = vpop.f32.mrb[0].mxu0
        %v802 = vadd.f32 %v728, %v801
        %v803 = vpop.f32.mrb[0].mxu0
        %v804 = vadd.f32 %v732, %v803
        %805 = vdwg.mxu0
        %vm806 = vcmp.gt.f32.partialorder %v802, 0.0
        %vm807 = vcmp.gt.f32.partialorder %v804, 0.0
        %v808 = vmul.f32 %v802, 0.1
        %v809 = vmul.f32 %v804, 0.1
        %v810 = vsel %vm806, %v802, %v808
        %v811 = vsel %vm807, %v804, %v809
        %v812 = vld [vmem:[#allocation11] sm:$0xff]
        %v813 = vld [vmem:[#allocation11 + $0x8] sm:$0xff]
        %v814 = vld [vmem:[#allocation11 + $0x10] sm:$0xff]
        %v815 = vld [vmem:[#allocation11 + $0x18] sm:$0xff]
        %v816 = vld [vmem:[#allocation11 + $0x20] sm:$0xff]
        %v817 = vld [vmem:[#allocation11 + $0x28] sm:$0xff]
        %v818 = vld [vmem:[#allocation11 + $0x30] sm:$0xff]
        %v819 = vld [vmem:[#allocation11 + $0x38] sm:$0xff]
        %v820 = vld [vmem:[#allocation11 + $0x40] sm:$0xff]
        %v821 = vld [vmem:[#allocation11 + $0x48] sm:$0xff]
        %v822 = vld [vmem:[#allocation11 + $0x50] sm:$0xff]
        %v823 = vld [vmem:[#allocation11 + $0x58] sm:$0xff]
        %v824 = vld [vmem:[#allocation11 + $0x60] sm:$0xff]
        %v825 = vld [vmem:[#allocation11 + $0x68] sm:$0xff]
        %v826 = vld [vmem:[#allocation11 + $0x70] sm:$0xff]
        %v827 = vld [vmem:[#allocation11 + $0x78] sm:$0xff]
        %v828 = vld [vmem:[#allocation11 + $0x80] sm:$0xff]
        %v829 = vld [vmem:[#allocation11 + $0x88] sm:$0xff]
        %v830 = vld [vmem:[#allocation11 + $0x90] sm:$0xff]
        %v831 = vld [vmem:[#allocation11 + $0x98] sm:$0xff]
        %v832 = vld [vmem:[#allocation11 + $0xa0] sm:$0xff]
        %v833 = vld [vmem:[#allocation11 + $0xa8] sm:$0xff]
        %v834 = vld [vmem:[#allocation11 + $0xb0] sm:$0xff]
        %v835 = vld [vmem:[#allocation11 + $0xb8] sm:$0xff]
        %v836 = vld [vmem:[#allocation13] sm:$0x1]
        %v838 = vlaneseq
        %v839 = vshrl.u32 %v838, 7
        %v840 = vsub.s32 0, %v839
        %v841 = vrot.slane %v836, %v840
        %vm843 = vcmask 523264
        %v845 = vsel %vm843, %v811, 0
        %847 = vmatprep.subr.mxu0 0.0
        %848 = vmatpush1.msra.mxu0 %v812
        %849 = vmatprep.subr.mxu0 0.0
        %850 = vmatpush1.msra.mxu0 %v813
        %851 = vmatprep.subr.mxu0 0.0
        %852 = vmatpush1.msra.mxu0 %v814
        %853 = vmatprep.subr.mxu0 0.0
        %854 = vmatpush1.msra.mxu0 %v815
        %855 = vmatprep.subr.mxu0 0.0
        %856 = vmatpush1.msra.mxu0 %v816
        %857 = vmatprep.subr.mxu0 0.0
        %858 = vmatpush1.msra.mxu0 %v817
        %859 = vmatprep.subr.mxu0 0.0
        %860 = vmatpush1.msra.mxu0 %v818
        %861 = vmatprep.subr.mxu0 0.0
        %862 = vmatpush1.msra.mxu0 %v819
        %863 = vmatprep.subr.mxu0 0.0
        %864 = vmatpush1.msra.mxu0 %v820
        %865 = vmatprep.subr.mxu0 0.0
        %866 = vmatpush1.msra.mxu0 %v821
        %867 = vmatprep.subr.mxu0 0.0
        %868 = vmatpush1.msra.mxu0 %v822
        %869 = vmatprep.subr.mxu0 0.0
        %870 = vmatpush1.msra.mxu0 %v823
        %871 = vmatprep.subr.mxu0 0.0
        %872 = vmatpush1.msra.mxu0 %v824
        %873 = vmatprep.subr.mxu0 0.0
        %874 = vmatpush1.msra.mxu0 %v825
        %875 = vmatprep.subr.mxu0 0.0
        %876 = vmatpush1.msra.mxu0 %v826
        %877 = vmatprep.subr.mxu0 0.0
        %878 = vmatpush1.msra.mxu0 %v827
        %879 = vmatprep.subr.mxu0 0.0
        %880 = vmatpush1.msra.mxu0 %v828
        %881 = vmatprep.subr.mxu0 0.0
        %882 = vmatpush1.msra.mxu0 %v829
        %883 = vmatprep.subr.mxu0 0.0
        %884 = vmatpush1.msra.mxu0 %v830
        %885 = vmatprep.subr.mxu0 0.0
        %886 = vmatpush1.msra.mxu0 %v831
        %887 = vmatprep.subr.mxu0 0.0
        %888 = vmatpush1.msra.mxu0 %v832
        %889 = vmatprep.subr.mxu0 0.0
        %890 = vmatpush1.msra.mxu0 %v833
        %891 = vmatprep.subr.mxu0 0.0
        %892 = vmatpush1.msra.mxu0 %v834
        %893 = vmatprep.subr.mxu0 0.0
        %894 = vmatpush1.msra.mxu0 %v835
        %895 = vmatprep.subr.mxu0 0.0
        %896 = vmatpush1.msra.mxu0 0.0
        %897 = vmatprep.subr.mxu0 0.0
        %898 = vmatpush1.msra.mxu0 0.0
        %899 = vmatprep.subr.mxu0 0.0
        %900 = vmatpush1.msra.mxu0 0.0
        %901 = vmatprep.subr.mxu0 0.0
        %902 = vmatpush1.msra.mxu0 0.0
        %903 = vmatprep.subr.mxu0 0.0
        %904 = vmatpush1.msra.mxu0 0.0
        %905 = vmatprep.subr.mxu0 0.0
        %906 = vmatpush1.msra.mxu0 0.0
        %907 = vmatprep.subr.mxu0 0.0
        %908 = vmatpush1.msra.mxu0 0.0
        %909 = vmatprep.subr.mxu0 0.0
        %910 = vmatpush1.msra.mxu0 0.0
        %911 = vmatprep.mubr.f32.mxu0 %v845
        %912 = vmatmul.mubr.f32.gmra.mrb[0].mxu0 %v810
        %v913 = vpop.f32.mrb[0].mxu0
        %v914 = vadd.f32 %v841, %v913
        %v915 = vpop.f32.mrb[0].mxu0
        %916 = vdwg.mxu0
        %vm917 = vcmp.gt.f32.partialorder %v914, 0.0
        %v918 = vmul.f32 %v914, 0.1
        %v919 = vsel %vm917, %v914, %v918
        %v920 = vld [vmem:[#allocation14] sm:$0xff]
        %v921 = vld [vmem:[#allocation14 + $0x8] sm:$0xff]
        %v922 = vld [vmem:[#allocation14 + $0x10] sm:$0xff]
        %v923 = vld [vmem:[#allocation14 + $0x18] sm:$0xff]
        %v924 = vld [vmem:[#allocation14 + $0x20] sm:$0xff]
        %v925 = vld [vmem:[#allocation14 + $0x28] sm:$0xff]
        %v926 = vld [vmem:[#allocation14 + $0x30] sm:$0xff]
        %v927 = vld [vmem:[#allocation14 + $0x38] sm:$0xff]
        %v928 = vld [vmem:[#allocation14 + $0x40] sm:$0xff]
        %v929 = vld [vmem:[#allocation14 + $0x48] sm:$0xff]
        %v930 = vld [vmem:[#allocation14 + $0x50] sm:$0xff]
        %v931 = vld [vmem:[#allocation14 + $0x58] sm:$0xff]
        %v932 = vld [vmem:[#allocation14 + $0x60] sm:$0xff]
        %v933 = vld [vmem:[#allocation14 + $0x68] sm:$0xff]
        %v934 = vld [vmem:[#allocation14 + $0x70] sm:$0xff]
        %v935 = vld [vmem:[#allocation14 + $0x78] sm:$0xff]
        %v936 = vld [vmem:[#allocation16] sm:$0x1]
        %v938 = vlaneseq
        %v939 = vshrl.u32 %v938, 7
        %v940 = vsub.s32 0, %v939
        %v941 = vrot.slane %v936, %v940
        %943 = vmatprep.subr.mxu0 0.0
        %944 = vmatpush1.msra.mxu0 %v920
        %945 = vmatprep.subr.mxu0 0.0
        %946 = vmatpush1.msra.mxu0 %v921
        %947 = vmatprep.subr.mxu0 0.0
        %948 = vmatpush1.msra.mxu0 %v922
        %949 = vmatprep.subr.mxu0 0.0
        %950 = vmatpush1.msra.mxu0 %v923
        %951 = vmatprep.subr.mxu0 0.0
        %952 = vmatpush1.msra.mxu0 %v924
        %953 = vmatprep.subr.mxu0 0.0
        %954 = vmatpush1.msra.mxu0 %v925
        %955 = vmatprep.subr.mxu0 0.0
        %956 = vmatpush1.msra.mxu0 %v926
        %957 = vmatprep.subr.mxu0 0.0
        %958 = vmatpush1.msra.mxu0 %v927
        %959 = vmatprep.subr.mxu0 0.0
        %960 = vmatpush1.msra.mxu0 %v928
        %961 = vmatprep.subr.mxu0 0.0
        %962 = vmatpush1.msra.mxu0 %v929
        %963 = vmatprep.subr.mxu0 0.0
        %964 = vmatpush1.msra.mxu0 %v930
        %965 = vmatprep.subr.mxu0 0.0
        %966 = vmatpush1.msra.mxu0 %v931
        %967 = vmatprep.subr.mxu0 0.0
        %968 = vmatpush1.msra.mxu0 %v932
        %969 = vmatprep.subr.mxu0 0.0
        %970 = vmatpush1.msra.mxu0 %v933
        %971 = vmatprep.subr.mxu0 0.0
        %972 = vmatpush1.msra.mxu0 %v934
        %973 = vmatprep.subr.mxu0 0.0
        %974 = vmatpush1.msra.mxu0 %v935
        %975 = vmatprep.subr.mxu0 0.0
        %976 = vmatpush1.msra.mxu0 0.0
        %977 = vmatprep.subr.mxu0 0.0
        %978 = vmatpush1.msra.mxu0 0.0
        %979 = vmatprep.subr.mxu0 0.0
        %980 = vmatpush1.msra.mxu0 0.0
        %981 = vmatprep.subr.mxu0 0.0
        %982 = vmatpush1.msra.mxu0 0.0
        %983 = vmatprep.subr.mxu0 0.0
        %984 = vmatpush1.msra.mxu0 0.0
        %985 = vmatprep.subr.mxu0 0.0
        %986 = vmatpush1.msra.mxu0 0.0
        %987 = vmatprep.subr.mxu0 0.0
        %988 = vmatpush1.msra.mxu0 0.0
        %989 = vmatprep.subr.mxu0 0.0
        %990 = vmatpush1.msra.mxu0 0.0
        %991 = vmatprep.subr.mxu0 0.0
        %992 = vmatpush1.msra.mxu0 0.0
        %993 = vmatprep.subr.mxu0 0.0
        %994 = vmatpush1.msra.mxu0 0.0
        %995 = vmatprep.subr.mxu0 0.0
        %996 = vmatpush1.msra.mxu0 0.0
        %997 = vmatprep.subr.mxu0 0.0
        %998 = vmatpush1.msra.mxu0 0.0
        %999 = vmatprep.subr.mxu0 0.0
        %1000 = vmatpush1.msra.mxu0 0.0
        %1001 = vmatprep.subr.mxu0 0.0
        %1002 = vmatpush1.msra.mxu0 0.0
        %1003 = vmatprep.subr.mxu0 0.0
        %1004 = vmatpush1.msra.mxu0 0.0
        %1005 = vmatprep.subr.mxu0 0.0
        %1006 = vmatpush1.msra.mxu0 0.0
        %1007 = vmatprep.mubr.f32.mxu0 0.0
        %1008 = vmatmul.mubr.f32.gmra.mrb[0].mxu0 %v919
        %v1009 = vpop.f32.mrb[0].mxu0
        %v1010 = vadd.f32 %v941, %v1009
        %v1011 = vpop.f32.mrb[0].mxu0
        %1012 = vdwg.mxu0
        %vm1013 = vcmp.gt.f32.partialorder %v1010, 0.0
        %v1014 = vmul.f32 %v1010, 0.1
        %v1015 = vsel %vm1013, %v1010, %v1014
        %v1016 = vld [vmem:[#allocation17] sm:$0xff]
        %v1017 = vld [vmem:[#allocation17 + $0x8] sm:$0xff]
        %v1018 = vld [vmem:[#allocation17 + $0x10] sm:$0xff]
        %v1019 = vld [vmem:[#allocation17 + $0x18] sm:$0xff]
        %v1020 = vld [vmem:[#allocation17 + $0x20] sm:$0xff]
        %v1021 = vld [vmem:[#allocation17 + $0x28] sm:$0xff]
        %v1022 = vld [vmem:[#allocation17 + $0x30] sm:$0xff]
        %v1023 = vld [vmem:[#allocation17 + $0x38] sm:$0xff]
        %v1024 = vld [vmem:[#allocation17 + $0x40] sm:$0xff]
        %v1025 = vld [vmem:[#allocation17 + $0x48] sm:$0xff]
        %v1026 = vld [vmem:[#allocation17 + $0x50] sm:$0xff]
        %v1027 = vld [vmem:[#allocation17 + $0x58] sm:$0xff]
        %v1028 = vld [vmem:[#allocation17 + $0x60] sm:$0xff]
        %v1029 = vld [vmem:[#allocation17 + $0x68] sm:$0xff]
        %v1030 = vld [vmem:[#allocation17 + $0x70] sm:$0xff]
        %v1031 = vld [vmem:[#allocation17 + $0x78] sm:$0xff]
        %v1032 = vld [vmem:[#allocation19] sm:$0x1]
        %v1034 = vlaneseq
        %v1035 = vshrl.u32 %v1034, 7
        %v1036 = vsub.s32 0, %v1035
        %v1037 = vrot.slane %v1032, %v1036
        %1039 = vmatprep.subr.mxu0 0.0
        %1040 = vmatpush1.msra.mxu0 %v1016
        %1041 = vmatprep.subr.mxu0 0.0
        %1042 = vmatpush1.msra.mxu0 %v1017
        %1043 = vmatprep.subr.mxu0 0.0
        %1044 = vmatpush1.msra.mxu0 %v1018
        %1045 = vmatprep.subr.mxu0 0.0
        %1046 = vmatpush1.msra.mxu0 %v1019
        %1047 = vmatprep.subr.mxu0 0.0
        %1048 = vmatpush1.msra.mxu0 %v1020
        %1049 = vmatprep.subr.mxu0 0.0
        %1050 = vmatpush1.msra.mxu0 %v1021
        %1051 = vmatprep.subr.mxu0 0.0
        %1052 = vmatpush1.msra.mxu0 %v1022
        %1053 = vmatprep.subr.mxu0 0.0
        %1054 = vmatpush1.msra.mxu0 %v1023
        %1055 = vmatprep.subr.mxu0 0.0
        %1056 = vmatpush1.msra.mxu0 %v1024
        %1057 = vmatprep.subr.mxu0 0.0
        %1058 = vmatpush1.msra.mxu0 %v1025
        %1059 = vmatprep.subr.mxu0 0.0
        %1060 = vmatpush1.msra.mxu0 %v1026
        %1061 = vmatprep.subr.mxu0 0.0
        %1062 = vmatpush1.msra.mxu0 %v1027
        %1063 = vmatprep.subr.mxu0 0.0
        %1064 = vmatpush1.msra.mxu0 %v1028
        %1065 = vmatprep.subr.mxu0 0.0
        %1066 = vmatpush1.msra.mxu0 %v1029
        %1067 = vmatprep.subr.mxu0 0.0
        %1068 = vmatpush1.msra.mxu0 %v1030
        %1069 = vmatprep.subr.mxu0 0.0
        %1070 = vmatpush1.msra.mxu0 %v1031
        %1071 = vmatprep.subr.mxu0 0.0
        %1072 = vmatpush1.msra.mxu0 0.0
        %1073 = vmatprep.subr.mxu0 0.0
        %1074 = vmatpush1.msra.mxu0 0.0
        %1075 = vmatprep.subr.mxu0 0.0
        %1076 = vmatpush1.msra.mxu0 0.0
        %1077 = vmatprep.subr.mxu0 0.0
        %1078 = vmatpush1.msra.mxu0 0.0
        %1079 = vmatprep.subr.mxu0 0.0
        %1080 = vmatpush1.msra.mxu0 0.0
        %1081 = vmatprep.subr.mxu0 0.0
        %1082 = vmatpush1.msra.mxu0 0.0
        %1083 = vmatprep.subr.mxu0 0.0
        %1084 = vmatpush1.msra.mxu0 0.0
        %1085 = vmatprep.subr.mxu0 0.0
        %1086 = vmatpush1.msra.mxu0 0.0
        %1087 = vmatprep.subr.mxu0 0.0
        %1088 = vmatpush1.msra.mxu0 0.0
        %1089 = vmatprep.subr.mxu0 0.0
        %1090 = vmatpush1.msra.mxu0 0.0
        %1091 = vmatprep.subr.mxu0 0.0
        %1092 = vmatpush1.msra.mxu0 0.0
        %1093 = vmatprep.subr.mxu0 0.0
        %1094 = vmatpush1.msra.mxu0 0.0
        %1095 = vmatprep.subr.mxu0 0.0
        %1096 = vmatpush1.msra.mxu0 0.0
        %1097 = vmatprep.subr.mxu0 0.0
        %1098 = vmatpush1.msra.mxu0 0.0
        %1099 = vmatprep.subr.mxu0 0.0
        %1100 = vmatpush1.msra.mxu0 0.0
        %1101 = vmatprep.subr.mxu0 0.0
        %1102 = vmatpush1.msra.mxu0 0.0
        %1103 = vmatprep.mubr.f32.mxu0 0.0
        %1104 = vmatmul.mubr.f32.gmra.mrb[0].mxu0 %v1015
        %v1105 = vpop.f32.mrb[0].mxu0
        %v1106 = vadd.f32 %v1037, %v1105
        %v1107 = vpop.f32.mrb[0].mxu0
        %1108 = vdwg.mxu0
        %1109 = vst [vmem:[%s536] sm:$0xff] %v1106
        %s1110 = sand.u32 %s277, 1
        %s1111 = scalar_lea.sflag [#allocation4], %s1110
        %s1112 = sand.u32 %s277, 1
        %s1113 = smul.addr %s1112, 8
        %s1114 = scalar_lea.vmem [#allocation20], %s1113
        // Predicated region
        $region109: #{tpu_custom_call.1} parent=63 // pred_check
          %p1115 = pneg %p287
        $region110: #{tpu_custom_call.1} parent=63 // pred_check_branch
          %1117 = sbr.rel (%p1115) target = $region112
        $region111: #{tpu_custom_call.1} parent=63 // pred_region
          %s1119 = ssub.s32 128, 128
          %1120 = vsyncadd %s1111, %s1119
          %s1121 = smul.addr %s33, 128
          %s1122 = scalar_lea.hbm %s11, %s1121
          %s1124 = sshll.u32 %s1114, 4
          %s1125 = int_to_ptr.vmem [resolvable:$true] %s1124
          %1127 = dma.vmem_to_hbm [thread:$0]  %s1125, 128, %s1122, %s1111
        $region112: #{tpu_custom_call.1} parent=63 // pred_fallthru
          _
      $region64: #{tpu_custom_call.1} parent=5 // pred_fallthru
        _
      %p1128 = scmp.le.s32.totalorder 2, %s28
      // Predicated region
      $region113: #{tpu_custom_call.1} parent=5 // pred_check
        %p1129 = pneg %p1128
      $region114: #{tpu_custom_call.1} parent=5 // pred_check_branch
        %1131 = sbr.rel (%p1129) target = $region116
      $region115: #{tpu_custom_call.1} parent=5 // pred_region
        %s1132 = ssub.s32 %s28, 2
        // Predicated region
        $region117: #{tpu_custom_call.1} parent=115 // pred_check
          %p1133 = pneg %p293
        $region118: #{tpu_custom_call.1} parent=115 // pred_check_branch
          %1135 = sbr.rel (%p1133) target = $region120
        $region119: #{tpu_custom_call.1} parent=115 // pred_region
          %s1136 = sand.u32 %s278, 1
          %s1137 = scalar_lea.sflag [#allocation4], %s1136
          %s1138 = sand.u32 %s278, 1
          %s1139 = smul.addr %s1138, 8
          %s1140 = scalar_lea.vmem [#allocation20], %s1139
          %1141 = dma.done %s1137, 128
        $region120: #{tpu_custom_call.1} parent=115 // pred_fallthru
          _
      $region116: #{tpu_custom_call.1} parent=5 // pred_fallthru
        _
    $region6: #{tpu_custom_call.1} parent=1 // loop_footer
      %s32 = sadd.s32 1, %s28
    $region7: #{tpu_custom_call.1} parent=1 // loop_footer_branch
      %27 = sbr.rel target = $region3
    $region8: #{tpu_custom_call.1} parent=1 // loop_exit
      _
    %1142 = vsyncpa [#allocation3], 1
    %s1143 = scalar_lea.sflag [#allocation3], 1
    %1144 = vsyncpa %s1143, 1
    %1145 = vsyncpa [#allocation6], 1
    %1146 = vsyncpa [#allocation9], 1
    %1147 = vsyncpa [#allocation12], 1
    %1148 = vsyncpa [#allocation15], 1
    %1149 = vsyncpa [#allocation18], 1
    %1150 = vsyncpa [#allocation4], 1
    %s1151 = scalar_lea.sflag [#allocation4], 1
    %1152 = vsyncpa %s1151, 1

</llo_original>
